<compile_context>
chip_gen: v6e
topology: v6e:2x2x1
jax: 0.10.0
libtpu: 0.0.40
codegen_flags: <defaults>
</compile_context>

<pallas_src>
import functools

import jax
import jax.numpy as jnp
from jax import lax
from jax.experimental import pallas as pl
from jax.experimental.pallas import tpu as pltpu

PAD = 3        # halo rings: 1 (Sobel) + 1 (NMS) + 1 (hysteresis neighborhood)
_LANE = 128
_SUBLANE = 8


# ---------------------------------------------------------------------------
# In-kernel helpers
# ---------------------------------------------------------------------------
def _shift_rows(a, dr):
    """y[r, :] = a[clamp(r + dr), :] for dr in {-1, 0, +1} (edge clamp, sublane dir)."""
    if dr == 0:
        return a
    if dr > 0:
        return jnp.concatenate([a[1:], a[-1:]], axis=0)
    return jnp.concatenate([a[:1], a[:-1]], axis=0)


def _shift_cols(a, dc):
    """y[:, c] = a[:, (c + dc) mod Wp] — lane rotation on the XLU; the wraparound
    columns only land in halo/masked positions, so direction/wrap are harmless."""
    if dc == 0:
        return a
    return pltpu.roll(a, (-dc) % a.shape[1], axis=1)


def _sh(a, dr, dc):
    return _shift_cols(_shift_rows(a, dr), dc)


def _canny_edges(x, low, high):
    """x: (R, Wp) f32 grayscale (0..255) with >= PAD rows/cols of replicate halo.
    Returns a boolean edge map (same shape); only halo-interior pixels are valid."""
    # ---- Separable Sobel (cv2 aperture-3 kernels), L1 magnitude (L2gradient=False) ----
    vs = _shift_rows(x, -1) + 2.0 * x + _shift_rows(x, 1)   # vertical [1,2,1] smooth
    hs = _shift_cols(x, -1) + 2.0 * x + _shift_cols(x, 1)   # horizontal [1,2,1] smooth
    gx = _shift_cols(vs, 1) - _shift_cols(vs, -1)
    gy = _shift_rows(hs, 1) - _shift_rows(hs, -1)
    mag = jnp.abs(gx) + jnp.abs(gy)

    # ---- Non-maximum suppression: 8 rolled neighbours computed once, two selects ----
    w_ = _sh(mag, 0, -1)
    e_ = _sh(mag, 0, 1)
    n_ = _sh(mag, -1, 0)
    s_ = _sh(mag, 1, 0)
    nw = _sh(mag, -1, -1)
    ne = _sh(mag, -1, 1)
    sw = _sh(mag, 1, -1)
    se = _sh(mag, 1, 1)

    ax = jnp.abs(gx)
    ay = jnp.abs(gy)
    tan225 = 0.4142135623730951
    tan675 = 2.414213562373095
    horiz = ay <= tan225 * ax            # ~0 deg  -> W/E neighbours
    vert = ay >= tan675 * ax             # ~90 deg -> N/S neighbours
    same_sign = (gx * gy) >= 0.0         # ~45 deg vs ~135 deg diagonals
    n1 = jnp.where(horiz, w_, jnp.where(vert, n_, jnp.where(same_sign, nw, ne)))
    n2 = jnp.where(horiz, e_, jnp.where(vert, s_, jnp.where(same_sign, se, sw)))
    keep = (mag >= n1) & (mag >= n2)
    nms = jnp.where(keep, mag, 0.0)

    # ---- Double threshold + single-pass hysteresis ----
    # high > low  =>  strong implies weak, so
    #   strong | (weak & OR8(strong))  ==  weak & OR9(strong)   (built separably).
    strong = (nms > high).astype(jnp.float32)
    weak = nms > low
    row_m = jnp.maximum(jnp.maximum(_shift_cols(strong, -1), strong),
                        _shift_cols(strong, 1))
    box_m = jnp.maximum(jnp.maximum(_shift_rows(row_m, -1), row_m),
                        _shift_rows(row_m, 1))
    return weak & (box_m > 0.0)


def _canny_mse_kernel(t1_ref, t2_ref, out_ref, *, H, W, tile_rows, low, high):
    t = pl.program_id(0)
    x1 = t1_ref[0]                                   # (R, Wp) f32
    x2 = t2_ref[0]
    e1 = _canny_edges(x1, low, high)
    e2 = _canny_edges(x2, low, high)
    # Edge maps are {0,1}: (e1 - e2)^2 == (e1 != e2), so count mismatches exactly.
    mismatch = (e1 != e2).astype(jnp.float32)

    R, Wp = x1.shape
    rows = lax.broadcasted_iota(jnp.int32, (R, Wp), 0)
    cols = lax.broadcasted_iota(jnp.int32, (R, Wp), 1)
    global_row = t * tile_rows + rows - PAD
    valid = ((rows >= PAD) & (rows < PAD + tile_rows) & (global_row < H)
             & (cols >= PAD) & (cols < PAD + W))
    partial = jnp.sum(jnp.where(valid, mismatch, 0.0))

    # Lane-dense per-tile partial sum: one unmasked (8,128) store per grid step.
    out_ref[...] = jnp.full(out_ref.shape, partial, dtype=jnp.float32)


# ---------------------------------------------------------------------------
# Host-side glue (plain JAX)
# ---------------------------------------------------------------------------
def _rgb_to_gray_u8like(img):
    """img: (1, 3, H, W) float in [0, 1]. Emulates (img*255).astype(uint8) + cv2 RGB2GRAY."""
    x = jnp.clip(jnp.floor(img.astype(jnp.float32) * 255.0), 0.0, 255.0)
    r, g, b = x[0, 0], x[0, 1], x[0, 2]
    # TODO(synk): cv2 RGB2GRAY uses fixed-point round-half-up; jnp.round is half-to-even (±1 LSB).
    return jnp.round(0.299 * r + 0.587 * g + 0.114 * b)


def _stack_halo_tiles(gray, num_tiles, tile_rows, R, Wp, H, W):
    """(H, W) -> (num_tiles, R, Wp): per-tile PAD-row replicate halo + lane-dense width.
    Out-of-range rows/cols are edge-replicated (they are masked inside the kernel)."""
    r_idx = jnp.clip(jnp.arange(num_tiles)[:, None] * tile_rows
                     + jnp.arange(R)[None, :] - PAD, 0, H - 1)          # (T, R)
    c_idx = jnp.clip(jnp.arange(Wp) - PAD, 0, W - 1)                    # (Wp,)
    tiles = jnp.take(gray, r_idx, axis=0)                               # (T, R, W)
    return jnp.take(tiles, c_idx, axis=2)                               # (T, R, Wp)


@functools.partial(jax.jit, static_argnames=("low", "high"))
def canny_edge_loss(img1, img2, low=100.0, high=200.0):
    """img1, img2: (1, 3, H, W) float images in [0, 1]. Returns scalar MSE of Canny edge maps."""
    assert float(high) >= float(low)
    H, W = img1.shape[2], img1.shape[3]

    g1 = _rgb_to_gray_u8like(img1)
    g2 = _rgb_to_gray_u8like(img2)

    # Row-tile sizing: 122 + 2*PAD = 128 rows per tile keeps per-step VMEM modest
    # (fits v7x's smaller VMEM; re-deriveable by changing this one constant).
    tile_rows = min(H, 122)
    num_tiles = -(-H // tile_rows)
    R = -(-(tile_rows + 2 * PAD) // _SUBLANE) * _SUBLANE     # sublane-aligned rows
    Wp = -(-(W + 2 * PAD) // _LANE) * _LANE                  # lane-dense width

    t1 = _stack_halo_tiles(g1, num_tiles, tile_rows, R, Wp, H, W)
    t2 = _stack_halo_tiles(g2, num_tiles, tile_rows, R, Wp, H, W)

    kernel = functools.partial(_canny_mse_kernel, H=H, W=W, tile_rows=tile_rows,
                               low=float(low), high=float(high))
    partials = pl.pallas_call(
        kernel,
        out_shape=jax.ShapeDtypeStruct((num_tiles, _SUBLANE, _LANE), jnp.float32),
        grid_spec=pltpu.PrefetchScalarGridSpec(
            num_scalar_prefetch=0,
            grid=(num_tiles,),
            in_specs=[pl.BlockSpec((1, R, Wp), lambda t: (t, 0, 0)),
                      pl.BlockSpec((1, R, Wp), lambda t: (t, 0, 0))],
            out_specs=pl.BlockSpec((1, _SUBLANE, _LANE), lambda t: (t, 0, 0)),
        ),
        compiler_params=pltpu.CompilerParams(
            dimension_semantics=("parallel",),
            vmem_limit_bytes=32 * 1024 * 1024,
        ),
    )(t1, t2)

    return jnp.sum(partials[:, 0, 0]) / jnp.float32(H * W)


if __name__ == "__main__":
    key = jax.random.PRNGKey(0)
    k1, k2 = jax.random.split(key)
    # B=1 is required by the original module (squeeze(0) + 3-channel RGB permute).
    img1 = jax.random.uniform(k1, (1, 3, 16, 16), dtype=jnp.float32)
    img2 = jax.random.uniform(k2, (1, 3, 16, 16), dtype=jnp.float32)

    loss = canny_edge_loss(img1, img2)
    jax.block_until_ready(loss)
    print("KERNEL_OK")
</pallas_src>

<mosaic_0001>
module attributes {stable_mosaic.version = 11 : i64} {
  func.func @_canny_mse_kernel(%arg0: i32, %arg1: memref<1x24x128xf32, #tpu.memory_space<vmem>>, %arg2: memref<1x24x128xf32, #tpu.memory_space<vmem>>, %arg3: memref<1x8x128xf32, #tpu.memory_space<vmem>>) attributes {dimension_semantics = [#tpu.dimension_semantics<parallel>], iteration_bounds = array<i64: 1>, scalar_prefetch = 0 : i64, scratch_operands = 0 : i64, tpu.core_type = #tpu.core_type<tc>, window_params = [{transform_indices = @transform_0, window_bounds = array<i64: 1, 24, 128>}, {transform_indices = @transform_1, window_bounds = array<i64: 1, 24, 128>}, {transform_indices = @transform_2, window_bounds = array<i64: 1, 8, 128>}]} {
    %c0 = arith.constant 0 : index
    %c0_0 = arith.constant 0 : index
    %c0_1 = arith.constant 0 : index
    %0 = vector.load %arg1[%c0, %c0_0, %c0_1] : memref<1x24x128xf32, #tpu.memory_space<vmem>>, vector<1x24x128xf32>
    %1 = vector.shape_cast %0 : vector<1x24x128xf32> to vector<24x128xf32>
    %c0_2 = arith.constant 0 : index
    %c0_3 = arith.constant 0 : index
    %c0_4 = arith.constant 0 : index
    %2 = vector.load %arg2[%c0_2, %c0_3, %c0_4] : memref<1x24x128xf32, #tpu.memory_space<vmem>>, vector<1x24x128xf32>
    %3 = vector.shape_cast %2 : vector<1x24x128xf32> to vector<24x128xf32>
    %4 = vector.extract_strided_slice %1 {offsets = [0, 0], sizes = [1, 128], strides = [1, 1]} : vector<24x128xf32> to vector<1x128xf32>
    %5 = vector.extract_strided_slice %1 {offsets = [0, 0], sizes = [23, 128], strides = [1, 1]} : vector<24x128xf32> to vector<23x128xf32>
    %6 = tpu.concatenate %4, %5 in 0 : vector<1x128xf32>, vector<23x128xf32> -> vector<24x128xf32>
    %cst = arith.constant 2.000000e+00 : f32
    %7 = vector.broadcast %cst : f32 to vector<24x128xf32>
    %8 = arith.mulf %7, %1 : vector<24x128xf32>
    %9 = arith.addf %6, %8 : vector<24x128xf32>
    %10 = vector.extract_strided_slice %1 {offsets = [1, 0], sizes = [23, 128], strides = [1, 1]} : vector<24x128xf32> to vector<23x128xf32>
    %11 = vector.extract_strided_slice %1 {offsets = [23, 0], sizes = [1, 128], strides = [1, 1]} : vector<24x128xf32> to vector<1x128xf32>
    %12 = tpu.concatenate %10, %11 in 0 : vector<23x128xf32>, vector<1x128xf32> -> vector<24x128xf32>
    %13 = arith.addf %9, %12 : vector<24x128xf32>
    %c1_i32 = arith.constant 1 : i32
    %14 = tpu.dynamic_rotate %1 by %c1_i32 dim 1 : vector<24x128xf32>, i32 -> vector<24x128xf32>
    %cst_5 = arith.constant 2.000000e+00 : f32
    %15 = vector.broadcast %cst_5 : f32 to vector<24x128xf32>
    %16 = arith.mulf %15, %1 : vector<24x128xf32>
    %17 = arith.addf %14, %16 : vector<24x128xf32>
    %c127_i32 = arith.constant 127 : i32
    %18 = tpu.dynamic_rotate %1 by %c127_i32 dim 1 : vector<24x128xf32>, i32 -> vector<24x128xf32>
    %19 = arith.addf %17, %18 : vector<24x128xf32>
    %c127_i32_6 = arith.constant 127 : i32
    %20 = tpu.dynamic_rotate %13 by %c127_i32_6 dim 1 : vector<24x128xf32>, i32 -> vector<24x128xf32>
    %c1_i32_7 = arith.constant 1 : i32
    %21 = tpu.dynamic_rotate %13 by %c1_i32_7 dim 1 : vector<24x128xf32>, i32 -> vector<24x128xf32>
    %22 = arith.subf %20, %21 : vector<24x128xf32>
    %23 = vector.extract_strided_slice %19 {offsets = [1, 0], sizes = [23, 128], strides = [1, 1]} : vector<24x128xf32> to vector<23x128xf32>
    %24 = vector.extract_strided_slice %19 {offsets = [23, 0], sizes = [1, 128], strides = [1, 1]} : vector<24x128xf32> to vector<1x128xf32>
    %25 = tpu.concatenate %23, %24 in 0 : vector<23x128xf32>, vector<1x128xf32> -> vector<24x128xf32>
    %26 = vector.extract_strided_slice %19 {offsets = [0, 0], sizes = [1, 128], strides = [1, 1]} : vector<24x128xf32> to vector<1x128xf32>
    %27 = vector.extract_strided_slice %19 {offsets = [0, 0], sizes = [23, 128], strides = [1, 1]} : vector<24x128xf32> to vector<23x128xf32>
    %28 = tpu.concatenate %26, %27 in 0 : vector<1x128xf32>, vector<23x128xf32> -> vector<24x128xf32>
    %29 = arith.subf %25, %28 : vector<24x128xf32>
    %30 = math.absf %22 : vector<24x128xf32>
    %31 = math.absf %29 : vector<24x128xf32>
    %32 = arith.addf %30, %31 : vector<24x128xf32>
    %c1_i32_8 = arith.constant 1 : i32
    %33 = tpu.dynamic_rotate %32 by %c1_i32_8 dim 1 : vector<24x128xf32>, i32 -> vector<24x128xf32>
    %c127_i32_9 = arith.constant 127 : i32
    %34 = tpu.dynamic_rotate %32 by %c127_i32_9 dim 1 : vector<24x128xf32>, i32 -> vector<24x128xf32>
    %35 = vector.extract_strided_slice %32 {offsets = [0, 0], sizes = [1, 128], strides = [1, 1]} : vector<24x128xf32> to vector<1x128xf32>
    %36 = vector.extract_strided_slice %32 {offsets = [0, 0], sizes = [23, 128], strides = [1, 1]} : vector<24x128xf32> to vector<23x128xf32>
    %37 = tpu.concatenate %35, %36 in 0 : vector<1x128xf32>, vector<23x128xf32> -> vector<24x128xf32>
    %38 = vector.extract_strided_slice %32 {offsets = [1, 0], sizes = [23, 128], strides = [1, 1]} : vector<24x128xf32> to vector<23x128xf32>
    %39 = vector.extract_strided_slice %32 {offsets = [23, 0], sizes = [1, 128], strides = [1, 1]} : vector<24x128xf32> to vector<1x128xf32>
    %40 = tpu.concatenate %38, %39 in 0 : vector<23x128xf32>, vector<1x128xf32> -> vector<24x128xf32>
    %41 = vector.extract_strided_slice %32 {offsets = [0, 0], sizes = [1, 128], strides = [1, 1]} : vector<24x128xf32> to vector<1x128xf32>
    %42 = vector.extract_strided_slice %32 {offsets = [0, 0], sizes = [23, 128], strides = [1, 1]} : vector<24x128xf32> to vector<23x128xf32>
    %43 = tpu.concatenate %41, %42 in 0 : vector<1x128xf32>, vector<23x128xf32> -> vector<24x128xf32>
    %c1_i32_10 = arith.constant 1 : i32
    %44 = tpu.dynamic_rotate %43 by %c1_i32_10 dim 1 : vector<24x128xf32>, i32 -> vector<24x128xf32>
    %45 = vector.extract_strided_slice %32 {offsets = [0, 0], sizes = [1, 128], strides = [1, 1]} : vector<24x128xf32> to vector<1x128xf32>
    %46 = vector.extract_strided_slice %32 {offsets = [0, 0], sizes = [23, 128], strides = [1, 1]} : vector<24x128xf32> to vector<23x128xf32>
    %47 = tpu.concatenate %45, %46 in 0 : vector<1x128xf32>, vector<23x128xf32> -> vector<24x128xf32>
    %c127_i32_11 = arith.constant 127 : i32
    %48 = tpu.dynamic_rotate %47 by %c127_i32_11 dim 1 : vector<24x128xf32>, i32 -> vector<24x128xf32>
    %49 = vector.extract_strided_slice %32 {offsets = [1, 0], sizes = [23, 128], strides = [1, 1]} : vector<24x128xf32> to vector<23x128xf32>
    %50 = vector.extract_strided_slice %32 {offsets = [23, 0], sizes = [1, 128], strides = [1, 1]} : vector<24x128xf32> to vector<1x128xf32>
    %51 = tpu.concatenate %49, %50 in 0 : vector<23x128xf32>, vector<1x128xf32> -> vector<24x128xf32>
    %c1_i32_12 = arith.constant 1 : i32
    %52 = tpu.dynamic_rotate %51 by %c1_i32_12 dim 1 : vector<24x128xf32>, i32 -> vector<24x128xf32>
    %53 = vector.extract_strided_slice %32 {offsets = [1, 0], sizes = [23, 128], strides = [1, 1]} : vector<24x128xf32> to vector<23x128xf32>
    %54 = vector.extract_strided_slice %32 {offsets = [23, 0], sizes = [1, 128], strides = [1, 1]} : vector<24x128xf32> to vector<1x128xf32>
    %55 = tpu.concatenate %53, %54 in 0 : vector<23x128xf32>, vector<1x128xf32> -> vector<24x128xf32>
    %c127_i32_13 = arith.constant 127 : i32
    %56 = tpu.dynamic_rotate %55 by %c127_i32_13 dim 1 : vector<24x128xf32>, i32 -> vector<24x128xf32>
    %57 = math.absf %22 : vector<24x128xf32>
    %58 = math.absf %29 : vector<24x128xf32>
    %cst_14 = arith.constant 0.414213568 : f32
    %59 = vector.broadcast %cst_14 : f32 to vector<24x128xf32>
    %60 = arith.mulf %59, %57 : vector<24x128xf32>
    %61 = arith.cmpf ole, %58, %60 : vector<24x128xf32>
    %cst_15 = arith.constant 2.41421366 : f32
    %62 = vector.broadcast %cst_15 : f32 to vector<24x128xf32>
    %63 = arith.mulf %62, %57 : vector<24x128xf32>
    %64 = arith.cmpf oge, %58, %63 : vector<24x128xf32>
    %65 = arith.mulf %22, %29 : vector<24x128xf32>
    %cst_16 = arith.constant 0.000000e+00 : f32
    %66 = vector.broadcast %cst_16 : f32 to vector<24x128xf32>
    %67 = arith.cmpf oge, %65, %66 : vector<24x128xf32>
    %68 = arith.select %67, %44, %48 : vector<24x128xi1>, vector<24x128xf32>
    %69 = arith.select %64, %37, %68 : vector<24x128xi1>, vector<24x128xf32>
    %70 = arith.select %61, %33, %69 : vector<24x128xi1>, vector<24x128xf32>
    %71 = arith.select %67, %56, %52 : vector<24x128xi1>, vector<24x128xf32>
    %72 = arith.select %64, %40, %71 : vector<24x128xi1>, vector<24x128xf32>
    %73 = arith.select %61, %34, %72 : vector<24x128xi1>, vector<24x128xf32>
    %74 = arith.cmpf oge, %32, %70 : vector<24x128xf32>
    %75 = arith.cmpf oge, %32, %73 : vector<24x128xf32>
    %76 = arith.andi %74, %75 : vector<24x128xi1>
    %cst_17 = arith.constant 0.000000e+00 : f32
    %77 = vector.broadcast %cst_17 : f32 to vector<24x128xf32>
    %78 = arith.select %76, %32, %77 : vector<24x128xi1>, vector<24x128xf32>
    %cst_18 = arith.constant 2.000000e+02 : f32
    %79 = vector.broadcast %cst_18 : f32 to vector<24x128xf32>
    %80 = arith.cmpf ogt, %78, %79 : vector<24x128xf32>
    %81 = arith.extui %80 : vector<24x128xi1> to vector<24x128xi32>
    %82 = arith.sitofp %81 : vector<24x128xi32> to vector<24x128xf32>
    %cst_19 = arith.constant 1.000000e+02 : f32
    %83 = vector.broadcast %cst_19 : f32 to vector<24x128xf32>
    %84 = arith.cmpf ogt, %78, %83 : vector<24x128xf32>
    %c1_i32_20 = arith.constant 1 : i32
    %85 = tpu.dynamic_rotate %82 by %c1_i32_20 dim 1 : vector<24x128xf32>, i32 -> vector<24x128xf32>
    %86 = arith.maximumf %85, %82 : vector<24x128xf32>
    %c127_i32_21 = arith.constant 127 : i32
    %87 = tpu.dynamic_rotate %82 by %c127_i32_21 dim 1 : vector<24x128xf32>, i32 -> vector<24x128xf32>
    %88 = arith.maximumf %86, %87 : vector<24x128xf32>
    %89 = vector.extract_strided_slice %88 {offsets = [0, 0], sizes = [1, 128], strides = [1, 1]} : vector<24x128xf32> to vector<1x128xf32>
    %90 = vector.extract_strided_slice %88 {offsets = [0, 0], sizes = [23, 128], strides = [1, 1]} : vector<24x128xf32> to vector<23x128xf32>
    %91 = tpu.concatenate %89, %90 in 0 : vector<1x128xf32>, vector<23x128xf32> -> vector<24x128xf32>
    %92 = arith.maximumf %91, %88 : vector<24x128xf32>
    %93 = vector.extract_strided_slice %88 {offsets = [1, 0], sizes = [23, 128], strides = [1, 1]} : vector<24x128xf32> to vector<23x128xf32>
    %94 = vector.extract_strided_slice %88 {offsets = [23, 0], sizes = [1, 128], strides = [1, 1]} : vector<24x128xf32> to vector<1x128xf32>
    %95 = tpu.concatenate %93, %94 in 0 : vector<23x128xf32>, vector<1x128xf32> -> vector<24x128xf32>
    %96 = arith.maximumf %92, %95 : vector<24x128xf32>
    %cst_22 = arith.constant 0.000000e+00 : f32
    %97 = vector.broadcast %cst_22 : f32 to vector<24x128xf32>
    %98 = arith.cmpf ogt, %96, %97 : vector<24x128xf32>
    %99 = arith.andi %84, %98 : vector<24x128xi1>
    %100 = vector.extract_strided_slice %3 {offsets = [0, 0], sizes = [1, 128], strides = [1, 1]} : vector<24x128xf32> to vector<1x128xf32>
    %101 = vector.extract_strided_slice %3 {offsets = [0, 0], sizes = [23, 128], strides = [1, 1]} : vector<24x128xf32> to vector<23x128xf32>
    %102 = tpu.concatenate %100, %101 in 0 : vector<1x128xf32>, vector<23x128xf32> -> vector<24x128xf32>
    %cst_23 = arith.constant 2.000000e+00 : f32
    %103 = vector.broadcast %cst_23 : f32 to vector<24x128xf32>
    %104 = arith.mulf %103, %3 : vector<24x128xf32>
    %105 = arith.addf %102, %104 : vector<24x128xf32>
    %106 = vector.extract_strided_slice %3 {offsets = [1, 0], sizes = [23, 128], strides = [1, 1]} : vector<24x128xf32> to vector<23x128xf32>
    %107 = vector.extract_strided_slice %3 {offsets = [23, 0], sizes = [1, 128], strides = [1, 1]} : vector<24x128xf32> to vector<1x128xf32>
    %108 = tpu.concatenate %106, %107 in 0 : vector<23x128xf32>, vector<1x128xf32> -> vector<24x128xf32>
    %109 = arith.addf %105, %108 : vector<24x128xf32>
    %c1_i32_24 = arith.constant 1 : i32
    %110 = tpu.dynamic_rotate %3 by %c1_i32_24 dim 1 : vector<24x128xf32>, i32 -> vector<24x128xf32>
    %cst_25 = arith.constant 2.000000e+00 : f32
    %111 = vector.broadcast %cst_25 : f32 to vector<24x128xf32>
    %112 = arith.mulf %111, %3 : vector<24x128xf32>
    %113 = arith.addf %110, %112 : vector<24x128xf32>
    %c127_i32_26 = arith.constant 127 : i32
    %114 = tpu.dynamic_rotate %3 by %c127_i32_26 dim 1 : vector<24x128xf32>, i32 -> vector<24x128xf32>
    %115 = arith.addf %113, %114 : vector<24x128xf32>
    %c127_i32_27 = arith.constant 127 : i32
    %116 = tpu.dynamic_rotate %109 by %c127_i32_27 dim 1 : vector<24x128xf32>, i32 -> vector<24x128xf32>
    %c1_i32_28 = arith.constant 1 : i32
    %117 = tpu.dynamic_rotate %109 by %c1_i32_28 dim 1 : vector<24x128xf32>, i32 -> vector<24x128xf32>
    %118 = arith.subf %116, %117 : vector<24x128xf32>
    %119 = vector.extract_strided_slice %115 {offsets = [1, 0], sizes = [23, 128], strides = [1, 1]} : vector<24x128xf32> to vector<23x128xf32>
    %120 = vector.extract_strided_slice %115 {offsets = [23, 0], sizes = [1, 128], strides = [1, 1]} : vector<24x128xf32> to vector<1x128xf32>
    %121 = tpu.concatenate %119, %120 in 0 : vector<23x128xf32>, vector<1x128xf32> -> vector<24x128xf32>
    %122 = vector.extract_strided_slice %115 {offsets = [0, 0], sizes = [1, 128], strides = [1, 1]} : vector<24x128xf32> to vector<1x128xf32>
    %123 = vector.extract_strided_slice %115 {offsets = [0, 0], sizes = [23, 128], strides = [1, 1]} : vector<24x128xf32> to vector<23x128xf32>
    %124 = tpu.concatenate %122, %123 in 0 : vector<1x128xf32>, vector<23x128xf32> -> vector<24x128xf32>
    %125 = arith.subf %121, %124 : vector<24x128xf32>
    %126 = math.absf %118 : vector<24x128xf32>
    %127 = math.absf %125 : vector<24x128xf32>
    %128 = arith.addf %126, %127 : vector<24x128xf32>
    %c1_i32_29 = arith.constant 1 : i32
    %129 = tpu.dynamic_rotate %128 by %c1_i32_29 dim 1 : vector<24x128xf32>, i32 -> vector<24x128xf32>
    %c127_i32_30 = arith.constant 127 : i32
    %130 = tpu.dynamic_rotate %128 by %c127_i32_30 dim 1 : vector<24x128xf32>, i32 -> vector<24x128xf32>
    %131 = vector.extract_strided_slice %128 {offsets = [0, 0], sizes = [1, 128], strides = [1, 1]} : vector<24x128xf32> to vector<1x128xf32>
    %132 = vector.extract_strided_slice %128 {offsets = [0, 0], sizes = [23, 128], strides = [1, 1]} : vector<24x128xf32> to vector<23x128xf32>
    %133 = tpu.concatenate %131, %132 in 0 : vector<1x128xf32>, vector<23x128xf32> -> vector<24x128xf32>
    %134 = vector.extract_strided_slice %128 {offsets = [1, 0], sizes = [23, 128], strides = [1, 1]} : vector<24x128xf32> to vector<23x128xf32>
    %135 = vector.extract_strided_slice %128 {offsets = [23, 0], sizes = [1, 128], strides = [1, 1]} : vector<24x128xf32> to vector<1x128xf32>
    %136 = tpu.concatenate %134, %135 in 0 : vector<23x128xf32>, vector<1x128xf32> -> vector<24x128xf32>
    %137 = vector.extract_strided_slice %128 {offsets = [0, 0], sizes = [1, 128], strides = [1, 1]} : vector<24x128xf32> to vector<1x128xf32>
    %138 = vector.extract_strided_slice %128 {offsets = [0, 0], sizes = [23, 128], strides = [1, 1]} : vector<24x128xf32> to vector<23x128xf32>
    %139 = tpu.concatenate %137, %138 in 0 : vector<1x128xf32>, vector<23x128xf32> -> vector<24x128xf32>
    %c1_i32_31 = arith.constant 1 : i32
    %140 = tpu.dynamic_rotate %139 by %c1_i32_31 dim 1 : vector<24x128xf32>, i32 -> vector<24x128xf32>
    %141 = vector.extract_strided_slice %128 {offsets = [0, 0], sizes = [1, 128], strides = [1, 1]} : vector<24x128xf32> to vector<1x128xf32>
    %142 = vector.extract_strided_slice %128 {offsets = [0, 0], sizes = [23, 128], strides = [1, 1]} : vector<24x128xf32> to vector<23x128xf32>
    %143 = tpu.concatenate %141, %142 in 0 : vector<1x128xf32>, vector<23x128xf32> -> vector<24x128xf32>
    %c127_i32_32 = arith.constant 127 : i32
    %144 = tpu.dynamic_rotate %143 by %c127_i32_32 dim 1 : vector<24x128xf32>, i32 -> vector<24x128xf32>
    %145 = vector.extract_strided_slice %128 {offsets = [1, 0], sizes = [23, 128], strides = [1, 1]} : vector<24x128xf32> to vector<23x128xf32>
    %146 = vector.extract_strided_slice %128 {offsets = [23, 0], sizes = [1, 128], strides = [1, 1]} : vector<24x128xf32> to vector<1x128xf32>
    %147 = tpu.concatenate %145, %146 in 0 : vector<23x128xf32>, vector<1x128xf32> -> vector<24x128xf32>
    %c1_i32_33 = arith.constant 1 : i32
    %148 = tpu.dynamic_rotate %147 by %c1_i32_33 dim 1 : vector<24x128xf32>, i32 -> vector<24x128xf32>
    %149 = vector.extract_strided_slice %128 {offsets = [1, 0], sizes = [23, 128], strides = [1, 1]} : vector<24x128xf32> to vector<23x128xf32>
    %150 = vector.extract_strided_slice %128 {offsets = [23, 0], sizes = [1, 128], strides = [1, 1]} : vector<24x128xf32> to vector<1x128xf32>
    %151 = tpu.concatenate %149, %150 in 0 : vector<23x128xf32>, vector<1x128xf32> -> vector<24x128xf32>
    %c127_i32_34 = arith.constant 127 : i32
    %152 = tpu.dynamic_rotate %151 by %c127_i32_34 dim 1 : vector<24x128xf32>, i32 -> vector<24x128xf32>
    %153 = math.absf %118 : vector<24x128xf32>
    %154 = math.absf %125 : vector<24x128xf32>
    %cst_35 = arith.constant 0.414213568 : f32
    %155 = vector.broadcast %cst_35 : f32 to vector<24x128xf32>
    %156 = arith.mulf %155, %153 : vector<24x128xf32>
    %157 = arith.cmpf ole, %154, %156 : vector<24x128xf32>
    %cst_36 = arith.constant 2.41421366 : f32
    %158 = vector.broadcast %cst_36 : f32 to vector<24x128xf32>
    %159 = arith.mulf %158, %153 : vector<24x128xf32>
    %160 = arith.cmpf oge, %154, %159 : vector<24x128xf32>
    %161 = arith.mulf %118, %125 : vector<24x128xf32>
    %cst_37 = arith.constant 0.000000e+00 : f32
    %162 = vector.broadcast %cst_37 : f32 to vector<24x128xf32>
    %163 = arith.cmpf oge, %161, %162 : vector<24x128xf32>
    %164 = arith.select %163, %140, %144 : vector<24x128xi1>, vector<24x128xf32>
    %165 = arith.select %160, %133, %164 : vector<24x128xi1>, vector<24x128xf32>
    %166 = arith.select %157, %129, %165 : vector<24x128xi1>, vector<24x128xf32>
    %167 = arith.select %163, %152, %148 : vector<24x128xi1>, vector<24x128xf32>
    %168 = arith.select %160, %136, %167 : vector<24x128xi1>, vector<24x128xf32>
    %169 = arith.select %157, %130, %168 : vector<24x128xi1>, vector<24x128xf32>
    %170 = arith.cmpf oge, %128, %166 : vector<24x128xf32>
    %171 = arith.cmpf oge, %128, %169 : vector<24x128xf32>
    %172 = arith.andi %170, %171 : vector<24x128xi1>
    %cst_38 = arith.constant 0.000000e+00 : f32
    %173 = vector.broadcast %cst_38 : f32 to vector<24x128xf32>
    %174 = arith.select %172, %128, %173 : vector<24x128xi1>, vector<24x128xf32>
    %cst_39 = arith.constant 2.000000e+02 : f32
    %175 = vector.broadcast %cst_39 : f32 to vector<24x128xf32>
    %176 = arith.cmpf ogt, %174, %175 : vector<24x128xf32>
    %177 = arith.extui %176 : vector<24x128xi1> to vector<24x128xi32>
    %178 = arith.sitofp %177 : vector<24x128xi32> to vector<24x128xf32>
    %cst_40 = arith.constant 1.000000e+02 : f32
    %179 = vector.broadcast %cst_40 : f32 to vector<24x128xf32>
    %180 = arith.cmpf ogt, %174, %179 : vector<24x128xf32>
    %c1_i32_41 = arith.constant 1 : i32
    %181 = tpu.dynamic_rotate %178 by %c1_i32_41 dim 1 : vector<24x128xf32>, i32 -> vector<24x128xf32>
    %182 = arith.maximumf %181, %178 : vector<24x128xf32>
    %c127_i32_42 = arith.constant 127 : i32
    %183 = tpu.dynamic_rotate %178 by %c127_i32_42 dim 1 : vector<24x128xf32>, i32 -> vector<24x128xf32>
    %184 = arith.maximumf %182, %183 : vector<24x128xf32>
    %185 = vector.extract_strided_slice %184 {offsets = [0, 0], sizes = [1, 128], strides = [1, 1]} : vector<24x128xf32> to vector<1x128xf32>
    %186 = vector.extract_strided_slice %184 {offsets = [0, 0], sizes = [23, 128], strides = [1, 1]} : vector<24x128xf32> to vector<23x128xf32>
    %187 = tpu.concatenate %185, %186 in 0 : vector<1x128xf32>, vector<23x128xf32> -> vector<24x128xf32>
    %188 = arith.maximumf %187, %184 : vector<24x128xf32>
    %189 = vector.extract_strided_slice %184 {offsets = [1, 0], sizes = [23, 128], strides = [1, 1]} : vector<24x128xf32> to vector<23x128xf32>
    %190 = vector.extract_strided_slice %184 {offsets = [23, 0], sizes = [1, 128], strides = [1, 1]} : vector<24x128xf32> to vector<1x128xf32>
    %191 = tpu.concatenate %189, %190 in 0 : vector<23x128xf32>, vector<1x128xf32> -> vector<24x128xf32>
    %192 = arith.maximumf %188, %191 : vector<24x128xf32>
    %cst_43 = arith.constant 0.000000e+00 : f32
    %193 = vector.broadcast %cst_43 : f32 to vector<24x128xf32>
    %194 = arith.cmpf ogt, %192, %193 : vector<24x128xf32>
    %195 = arith.andi %180, %194 : vector<24x128xi1>
    %196 = arith.xori %99, %195 : vector<24x128xi1>
    %197 = arith.extui %196 : vector<24x128xi1> to vector<24x128xi32>
    %198 = arith.sitofp %197 : vector<24x128xi32> to vector<24x128xf32>
    %199 = tpu.iota {dimensions = array<i32: 0>} : vector<24x128xi32>
    %200 = tpu.iota {dimensions = array<i32: 1>} : vector<24x128xi32>
    %c16_i32 = arith.constant 16 : i32
    %201 = arith.muli %arg0, %c16_i32 : i32
    %202 = vector.broadcast %201 : i32 to vector<24x128xi32>
    %203 = arith.addi %202, %199 : vector<24x128xi32>
    %c3_i32 = arith.constant 3 : i32
    %204 = vector.broadcast %c3_i32 : i32 to vector<24x128xi32>
    %205 = arith.subi %203, %204 : vector<24x128xi32>
    %c3_i32_44 = arith.constant 3 : i32
    %206 = vector.broadcast %c3_i32_44 : i32 to vector<24x128xi32>
    %207 = arith.cmpi sge, %199, %206 : vector<24x128xi32>
    %c19_i32 = arith.constant 19 : i32
    %208 = vector.broadcast %c19_i32 : i32 to vector<24x128xi32>
    %209 = arith.cmpi slt, %199, %208 : vector<24x128xi32>
    %210 = arith.andi %207, %209 : vector<24x128xi1>
    %c16_i32_45 = arith.constant 16 : i32
    %211 = vector.broadcast %c16_i32_45 : i32 to vector<24x128xi32>
    %212 = arith.cmpi slt, %205, %211 : vector<24x128xi32>
    %213 = arith.andi %210, %212 : vector<24x128xi1>
    %c3_i32_46 = arith.constant 3 : i32
    %214 = vector.broadcast %c3_i32_46 : i32 to vector<24x128xi32>
    %215 = arith.cmpi sge, %200, %214 : vector<24x128xi32>
    %216 = arith.andi %213, %215 : vector<24x128xi1>
    %c19_i32_47 = arith.constant 19 : i32
    %217 = vector.broadcast %c19_i32_47 : i32 to vector<24x128xi32>
    %218 = arith.cmpi slt, %200, %217 : vector<24x128xi32>
    %219 = arith.andi %216, %218 : vector<24x128xi1>
    %cst_48 = arith.constant 0.000000e+00 : f32
    %220 = vector.broadcast %cst_48 : f32 to vector<24x128xf32>
    %221 = arith.select %219, %198, %220 : vector<24x128xi1>, vector<24x128xf32>
    %222 = vector.shape_cast %221 : vector<24x128xf32> to vector<1x24x128xf32>
    %cst_49 = arith.constant dense<0.000000e+00> : vector<1xf32>
    %223 = vector.multi_reduction <add>, %222, %cst_49 [1, 2] : vector<1x24x128xf32> to vector<1xf32>
    %224 = vector.shape_cast %223 : vector<1xf32> to vector<1x1x1xf32>
    %225 = vector.extract %224[0, 0, 0] : f32 from vector<1x1x1xf32>
    %226 = vector.broadcast %225 : f32 to vector<1x8x128xf32>
    %c0_50 = arith.constant 0 : index
    %c0_51 = arith.constant 0 : index
    %c0_52 = arith.constant 0 : index
    %227 = vector.load %arg3[%c0_50, %c0_51, %c0_52] : memref<1x8x128xf32, #tpu.memory_space<vmem>>, vector<1x8x128xf32>
    tpu.vector_store %arg3[%c0_50, %c0_51, %c0_52], %226 {strides = array<i32>} : memref<1x8x128xf32, #tpu.memory_space<vmem>>, vector<1x8x128xf32>,
    return
  }
  func.func @transform_0(%arg0: i32) -> (i32, i32, i32) {
    %c0_i32 = arith.constant 0 : i32
    %c0_i32_0 = arith.constant 0 : i32
    %c0_i32_1 = arith.constant 0 : i32
    return %arg0, %c0_i32, %c0_i32_0 : i32, i32, i32
  }
  func.func @transform_1(%arg0: i32) -> (i32, i32, i32) {
    %c0_i32 = arith.constant 0 : i32
    %c0_i32_0 = arith.constant 0 : i32
    %c0_i32_1 = arith.constant 0 : i32
    return %arg0, %c0_i32, %c0_i32_0 : i32, i32, i32
  }
  func.func @transform_2(%arg0: i32) -> (i32, i32, i32) {
    %c0_i32 = arith.constant 0 : i32
    %c0_i32_0 = arith.constant 0 : i32
    %c0_i32_1 = arith.constant 0 : i32
    return %arg0, %c0_i32, %c0_i32_0 : i32, i32, i32
  }
}

</mosaic_0001>

<llo_original>
// kernel: canny_edge_loss.1
$region0: #{canny_edge_loss.1}
  #allocation0 [shape = 'u32[]', space=smem, size = 0x4, offset = 0x4, fixed_abs, tag = 'smem constant byte address 0x4 - core index']
  #allocation1 [shape = 'u32[144,128]{1,0:T(1,128)}', space=vmem, size = 0x12000, scoped, tag = 'internal scratch']
  %s0 = inlined_call_operand.vmem [shape: f32[1,24,128], index: 0, kind: input, shape index: {}]
  %s1 = inlined_call_operand.vmem [shape: f32[1,24,128], index: 1, kind: input, shape index: {}]
  %s2 = inlined_call_operand.vmem [shape: f32[1,8,128], index: 2, kind: output, shape index: {}]
  %s3 = sld [smem:[#allocation0]]
  $region18: #{canny_edge_loss.1} parent=0
    _
  %s5 = ssub.s32 1, %s3
  %s6 = scalar_select 0, %s5, %s3
  // Predicated region
  $region2: #{canny_edge_loss.1} parent=0 // pred_check
    _
  $region3: #{canny_edge_loss.1} parent=0 // pred_check_branch
    %8 = sbr.rel (0) target = $region5
  $region4: #{canny_edge_loss.1} parent=0 // pred_region
    _
  $region5: #{canny_edge_loss.1} parent=0 // pred_fallthru
    _
  // Predicated region
  $region6: #{canny_edge_loss.1} parent=0 // pred_check
    _
  $region7: #{canny_edge_loss.1} parent=0 // pred_check_branch
    %10 = sbr.rel (0) target = $region9
  $region8: #{canny_edge_loss.1} parent=0 // pred_region
    _
  $region9: #{canny_edge_loss.1} parent=0 // pred_fallthru
    _
  %v11 = vld [vmem:[%s0] sm:$0xff]
  %v12 = vld [vmem:[%s0 + $0x8] sm:$0xff]
  %v13 = vld [vmem:[%s0 + $0x10] sm:$0xff]
  %v14 = vld [vmem:[%s1] sm:$0xff]
  %v15 = vld [vmem:[%s1 + $0x8] sm:$0xff]
  %v16 = vld [vmem:[%s1 + $0x10] sm:$0xff]
  %vm20 = vcmask 1040384
  %v21 = vrot.slane %v11, 7
  %v22 = vrot.slane %v12, 7
  %v23 = vsel %vm20, %v21, %v22
  %v24 = vrot.slane %v13, 7
  %v25 = vsel %vm20, %v22, %v24
  %v29 = vsel %vm20, %v11, %v21
  %v30 = vmul.f32 %v11, 2.0
  %v31 = vmul.f32 %v12, 2.0
  %v32 = vmul.f32 %v13, 2.0
  %v33 = vadd.f32 %v29, %v30
  %v34 = vadd.f32 %v23, %v31
  %v35 = vadd.f32 %v25, %v32
  %vm36 = vcmask 1046528
  %v37 = vrot.slane %v11, 1
  %v38 = vrot.slane %v12, 1
  %v39 = vsel %vm36, %v37, %v38
  %v40 = vrot.slane %v13, 1
  %v41 = vsel %vm36, %v38, %v40
  %v45 = vsel %vm36, %v40, %v13
  %v46 = vadd.f32 %v33, %v39
  %v47 = vadd.f32 %v34, %v41
  %v48 = vadd.f32 %v35, %v45
  %49 = vrot.lane.b32.xlu0 %v11, 1
  %v50 = vpop.permute.xlu0 %49
  %51 = vrot.lane.b32.xlu0 %v12, 1
  %v52 = vpop.permute.xlu0 %51
  %53 = vrot.lane.b32.xlu0 %v13, 1
  %v54 = vpop.permute.xlu0 %53
  %v55 = vadd.f32 %v50, %v30
  %v56 = vadd.f32 %v52, %v31
  %v57 = vadd.f32 %v54, %v32
  %58 = vrot.lane.b32.xlu0 %v11, 127
  %v59 = vpop.permute.xlu0 %58
  %60 = vrot.lane.b32.xlu0 %v12, 127
  %v61 = vpop.permute.xlu0 %60
  %62 = vrot.lane.b32.xlu0 %v13, 127
  %v63 = vpop.permute.xlu0 %62
  %v64 = vadd.f32 %v55, %v59
  %v65 = vadd.f32 %v56, %v61
  %v66 = vadd.f32 %v57, %v63
  %67 = vrot.lane.b32.xlu0 %v46, 127
  %v68 = vpop.permute.xlu0 %67
  %69 = vrot.lane.b32.xlu0 %v47, 127
  %v70 = vpop.permute.xlu0 %69
  %71 = vrot.lane.b32.xlu0 %v48, 127
  %v72 = vpop.permute.xlu0 %71
  %73 = vrot.lane.b32.xlu0 %v46, 1
  %v74 = vpop.permute.xlu0 %73
  %75 = vrot.lane.b32.xlu0 %v47, 1
  %v76 = vpop.permute.xlu0 %75
  %77 = vrot.lane.b32.xlu0 %v48, 1
  %v78 = vpop.permute.xlu0 %77
  %v79 = vsub.f32 %v68, %v74
  %v80 = vsub.f32 %v70, %v76
  %v81 = vsub.f32 %v72, %v78
  %v85 = vrot.slane %v64, 1
  %v86 = vrot.slane %v65, 1
  %v87 = vsel %vm36, %v85, %v86
  %v88 = vrot.slane %v66, 1
  %v89 = vsel %vm36, %v86, %v88
  %v93 = vsel %vm36, %v88, %v66
  %v94 = vrot.slane %v64, 7
  %v95 = vrot.slane %v65, 7
  %v96 = vsel %vm20, %v94, %v95
  %v97 = vrot.slane %v66, 7
  %v98 = vsel %vm20, %v95, %v97
  %v102 = vsel %vm20, %v64, %v94
  %v103 = vsub.f32 %v87, %v102
  %v104 = vsub.f32 %v89, %v96
  %v105 = vsub.f32 %v93, %v98
  %v106 = vand.u32 2147483647, %v79
  %v107 = vand.u32 2147483647, %v80
  %v108 = vand.u32 2147483647, %v81
  %v109 = vand.u32 2147483647, %v103
  %v110 = vand.u32 2147483647, %v104
  %v111 = vand.u32 2147483647, %v105
  %v112 = vadd.f32 %v106, %v109
  %v113 = vadd.f32 %v107, %v110
  %v114 = vadd.f32 %v108, %v111
  %115 = vrot.lane.b32.xlu0 %v112, 1
  %v116 = vpop.permute.xlu0 %115
  %117 = vrot.lane.b32.xlu0 %v113, 1
  %v118 = vpop.permute.xlu0 %117
  %119 = vrot.lane.b32.xlu0 %v114, 1
  %v120 = vpop.permute.xlu0 %119
  %121 = vrot.lane.b32.xlu0 %v112, 127
  %v122 = vpop.permute.xlu0 %121
  %123 = vrot.lane.b32.xlu0 %v113, 127
  %v124 = vpop.permute.xlu0 %123
  %125 = vrot.lane.b32.xlu0 %v114, 127
  %v126 = vpop.permute.xlu0 %125
  %v130 = vrot.slane %v112, 7
  %v131 = vrot.slane %v113, 7
  %v132 = vsel %vm20, %v130, %v131
  %v133 = vrot.slane %v114, 7
  %v134 = vsel %vm20, %v131, %v133
  %v138 = vsel %vm20, %v112, %v130
  %v139 = vrot.slane %v112, 1
  %v140 = vrot.slane %v113, 1
  %v141 = vsel %vm36, %v139, %v140
  %v142 = vrot.slane %v114, 1
  %v143 = vsel %vm36, %v140, %v142
  %v147 = vsel %vm36, %v142, %v114
  %148 = vrot.lane.b32.xlu0 %v138, 1
  %v149 = vpop.permute.xlu0 %148
  %150 = vrot.lane.b32.xlu0 %v132, 1
  %v151 = vpop.permute.xlu0 %150
  %152 = vrot.lane.b32.xlu0 %v134, 1
  %v153 = vpop.permute.xlu0 %152
  %154 = vrot.lane.b32.xlu0 %v138, 127
  %v155 = vpop.permute.xlu0 %154
  %156 = vrot.lane.b32.xlu0 %v132, 127
  %v157 = vpop.permute.xlu0 %156
  %158 = vrot.lane.b32.xlu0 %v134, 127
  %v159 = vpop.permute.xlu0 %158
  %160 = vrot.lane.b32.xlu0 %v141, 1
  %v161 = vpop.permute.xlu0 %160
  %162 = vrot.lane.b32.xlu0 %v143, 1
  %v163 = vpop.permute.xlu0 %162
  %164 = vrot.lane.b32.xlu0 %v147, 1
  %v165 = vpop.permute.xlu0 %164
  %166 = vrot.lane.b32.xlu0 %v141, 127
  %v167 = vpop.permute.xlu0 %166
  %168 = vrot.lane.b32.xlu0 %v143, 127
  %v169 = vpop.permute.xlu0 %168
  %170 = vrot.lane.b32.xlu0 %v147, 127
  %v171 = vpop.permute.xlu0 %170
  %v172 = vmul.f32 %v106, 0.41421357
  %v173 = vmul.f32 %v107, 0.41421357
  %v174 = vmul.f32 %v108, 0.41421357
  %vm175 = vcmp.le.f32.partialorder %v109, %v172
  %vm176 = vcmp.le.f32.partialorder %v110, %v173
  %vm177 = vcmp.le.f32.partialorder %v111, %v174
  %v178 = vmul.f32 %v106, 2.4142137
  %v179 = vmul.f32 %v107, 2.4142137
  %v180 = vmul.f32 %v108, 2.4142137
  %vm181 = vcmp.ge.f32.partialorder %v109, %v178
  %vm182 = vcmp.ge.f32.partialorder %v110, %v179
  %vm183 = vcmp.ge.f32.partialorder %v111, %v180
  %v184 = vmul.f32 %v79, %v103
  %v185 = vmul.f32 %v80, %v104
  %v186 = vmul.f32 %v81, %v105
  %vm187 = vcmp.ge.f32.partialorder %v184, 0.0
  %vm188 = vcmp.ge.f32.partialorder %v185, 0.0
  %vm189 = vcmp.ge.f32.partialorder %v186, 0.0
  %v190 = vsel %vm187, %v149, %v155
  %v191 = vsel %vm188, %v151, %v157
  %v192 = vsel %vm189, %v153, %v159
  %v193 = vsel %vm181, %v138, %v190
  %v194 = vsel %vm182, %v132, %v191
  %v195 = vsel %vm183, %v134, %v192
  %v196 = vsel %vm175, %v116, %v193
  %v197 = vsel %vm176, %v118, %v194
  %v198 = vsel %vm177, %v120, %v195
  %v199 = vsel %vm187, %v167, %v161
  %v200 = vsel %vm188, %v169, %v163
  %v201 = vsel %vm189, %v171, %v165
  %v202 = vsel %vm181, %v141, %v199
  %v203 = vsel %vm182, %v143, %v200
  %v204 = vsel %vm183, %v147, %v201
  %v205 = vsel %vm175, %v122, %v202
  %v206 = vsel %vm176, %v124, %v203
  %v207 = vsel %vm177, %v126, %v204
  %vm208 = vcmp.ge.f32.partialorder %v112, %v196
  %vm209 = vcmp.ge.f32.partialorder %v113, %v197
  %vm210 = vcmp.ge.f32.partialorder %v114, %v198
  %vm211 = vcmp.ge.f32.partialorder %v112, %v205
  %vm212 = vcmp.ge.f32.partialorder %v113, %v206
  %vm213 = vcmp.ge.f32.partialorder %v114, %v207
  %vm214 = vmand %vm208, %vm211
  %vm215 = vmand %vm209, %vm212
  %vm216 = vmand %vm210, %vm213
  %v217 = vsel %vm214, %v112, 0.0
  %v218 = vsel %vm215, %v113, 0.0
  %v219 = vsel %vm216, %v114, 0.0
  %vm220 = vcmp.gt.f32.partialorder %v217, 200.0
  %vm221 = vcmp.gt.f32.partialorder %v218, 200.0
  %vm222 = vcmp.gt.f32.partialorder %v219, 200.0
  %v223 = vsel %vm220, 1, 0
  %v224 = vsel %vm221, 1, 0
  %v225 = vsel %vm222, 1, 0
  %v226 = vcvt.s32.f32 %v223
  %v227 = vcvt.s32.f32 %v224
  %v228 = vcvt.s32.f32 %v225
  %vm229 = vcmp.gt.f32.partialorder %v217, 100.0
  %vm230 = vcmp.gt.f32.partialorder %v218, 100.0
  %vm231 = vcmp.gt.f32.partialorder %v219, 100.0
  %232 = vrot.lane.b32.xlu0 %v226, 1
  %v233 = vpop.permute.xlu0 %232
  %234 = vrot.lane.b32.xlu0 %v227, 1
  %v235 = vpop.permute.xlu0 %234
  %236 = vrot.lane.b32.xlu0 %v228, 1
  %v237 = vpop.permute.xlu0 %236
  %v238 = vmax.f32 %v233, %v226
  %v239 = vmax.f32 %v235, %v227
  %v240 = vmax.f32 %v237, %v228
  %241 = vrot.lane.b32.xlu0 %v226, 127
  %v242 = vpop.permute.xlu0 %241
  %243 = vrot.lane.b32.xlu0 %v227, 127
  %v244 = vpop.permute.xlu0 %243
  %245 = vrot.lane.b32.xlu0 %v228, 127
  %v246 = vpop.permute.xlu0 %245
  %v247 = vmax.f32 %v238, %v242
  %v248 = vmax.f32 %v239, %v244
  %v249 = vmax.f32 %v240, %v246
  %v253 = vrot.slane %v247, 7
  %v254 = vrot.slane %v248, 7
  %v255 = vsel %vm20, %v253, %v254
  %v256 = vrot.slane %v249, 7
  %v257 = vsel %vm20, %v254, %v256
  %v261 = vsel %vm20, %v247, %v253
  %v262 = vmax.f32 %v261, %v247
  %v263 = vmax.f32 %v255, %v248
  %v264 = vmax.f32 %v257, %v249
  %v265 = vrot.slane %v247, 1
  %v266 = vrot.slane %v248, 1
  %v267 = vsel %vm36, %v265, %v266
  %v268 = vrot.slane %v249, 1
  %v269 = vsel %vm36, %v266, %v268
  %v273 = vsel %vm36, %v268, %v249
  %v274 = vmax.f32 %v262, %v267
  %v275 = vmax.f32 %v263, %v269
  %v276 = vmax.f32 %v264, %v273
  %vm277 = vcmp.gt.f32.partialorder %v274, 0.0
  %vm278 = vcmp.gt.f32.partialorder %v275, 0.0
  %vm279 = vcmp.gt.f32.partialorder %v276, 0.0
  %vm280 = vmand %vm229, %vm277
  %vm281 = vmand %vm230, %vm278
  %vm282 = vmand %vm231, %vm279
  %v286 = vrot.slane %v14, 7
  %v287 = vrot.slane %v15, 7
  %v288 = vsel %vm20, %v286, %v287
  %v289 = vrot.slane %v16, 7
  %v290 = vsel %vm20, %v287, %v289
  %v294 = vsel %vm20, %v14, %v286
  %v295 = vmul.f32 %v14, 2.0
  %v296 = vmul.f32 %v15, 2.0
  %v297 = vmul.f32 %v16, 2.0
  %v298 = vadd.f32 %v294, %v295
  %v299 = vadd.f32 %v288, %v296
  %v300 = vadd.f32 %v290, %v297
  %v301 = vrot.slane %v14, 1
  %v302 = vrot.slane %v15, 1
  %v303 = vsel %vm36, %v301, %v302
  %v304 = vrot.slane %v16, 1
  %v305 = vsel %vm36, %v302, %v304
  %v309 = vsel %vm36, %v304, %v16
  %v310 = vadd.f32 %v298, %v303
  %v311 = vadd.f32 %v299, %v305
  %v312 = vadd.f32 %v300, %v309
  %313 = vrot.lane.b32.xlu0 %v14, 1
  %v314 = vpop.permute.xlu0 %313
  %315 = vrot.lane.b32.xlu0 %v15, 1
  %v316 = vpop.permute.xlu0 %315
  %317 = vrot.lane.b32.xlu0 %v16, 1
  %v318 = vpop.permute.xlu0 %317
  %v319 = vadd.f32 %v314, %v295
  %v320 = vadd.f32 %v316, %v296
  %v321 = vadd.f32 %v318, %v297
  %322 = vrot.lane.b32.xlu0 %v14, 127
  %v323 = vpop.permute.xlu0 %322
  %324 = vrot.lane.b32.xlu0 %v15, 127
  %v325 = vpop.permute.xlu0 %324
  %326 = vrot.lane.b32.xlu0 %v16, 127
  %v327 = vpop.permute.xlu0 %326
  %v328 = vadd.f32 %v319, %v323
  %v329 = vadd.f32 %v320, %v325
  %v330 = vadd.f32 %v321, %v327
  %331 = vrot.lane.b32.xlu0 %v310, 127
  %v332 = vpop.permute.xlu0 %331
  %333 = vrot.lane.b32.xlu0 %v311, 127
  %v334 = vpop.permute.xlu0 %333
  %335 = vrot.lane.b32.xlu0 %v312, 127
  %v336 = vpop.permute.xlu0 %335
  %337 = vrot.lane.b32.xlu0 %v310, 1
  %v338 = vpop.permute.xlu0 %337
  %339 = vrot.lane.b32.xlu0 %v311, 1
  %v340 = vpop.permute.xlu0 %339
  %341 = vrot.lane.b32.xlu0 %v312, 1
  %v342 = vpop.permute.xlu0 %341
  %v343 = vsub.f32 %v332, %v338
  %v344 = vsub.f32 %v334, %v340
  %v345 = vsub.f32 %v336, %v342
  %v349 = vrot.slane %v328, 1
  %v350 = vrot.slane %v329, 1
  %v351 = vsel %vm36, %v349, %v350
  %v352 = vrot.slane %v330, 1
  %v353 = vsel %vm36, %v350, %v352
  %v357 = vsel %vm36, %v352, %v330
  %v358 = vrot.slane %v328, 7
  %v359 = vrot.slane %v329, 7
  %v360 = vsel %vm20, %v358, %v359
  %v361 = vrot.slane %v330, 7
  %v362 = vsel %vm20, %v359, %v361
  %v366 = vsel %vm20, %v328, %v358
  %v367 = vsub.f32 %v351, %v366
  %v368 = vsub.f32 %v353, %v360
  %v369 = vsub.f32 %v357, %v362
  %v370 = vand.u32 2147483647, %v343
  %v371 = vand.u32 2147483647, %v344
  %v372 = vand.u32 2147483647, %v345
  %v373 = vand.u32 2147483647, %v367
  %v374 = vand.u32 2147483647, %v368
  %v375 = vand.u32 2147483647, %v369
  %v376 = vadd.f32 %v370, %v373
  %v377 = vadd.f32 %v371, %v374
  %v378 = vadd.f32 %v372, %v375
  %379 = vrot.lane.b32.xlu0 %v376, 1
  %v380 = vpop.permute.xlu0 %379
  %381 = vrot.lane.b32.xlu0 %v377, 1
  %v382 = vpop.permute.xlu0 %381
  %383 = vrot.lane.b32.xlu0 %v378, 1
  %v384 = vpop.permute.xlu0 %383
  %385 = vrot.lane.b32.xlu0 %v376, 127
  %v386 = vpop.permute.xlu0 %385
  %387 = vrot.lane.b32.xlu0 %v377, 127
  %v388 = vpop.permute.xlu0 %387
  %389 = vrot.lane.b32.xlu0 %v378, 127
  %v390 = vpop.permute.xlu0 %389
  %v394 = vrot.slane %v376, 7
  %v395 = vrot.slane %v377, 7
  %v396 = vsel %vm20, %v394, %v395
  %v397 = vrot.slane %v378, 7
  %v398 = vsel %vm20, %v395, %v397
  %v402 = vsel %vm20, %v376, %v394
  %v403 = vrot.slane %v376, 1
  %v404 = vrot.slane %v377, 1
  %v405 = vsel %vm36, %v403, %v404
  %v406 = vrot.slane %v378, 1
  %v407 = vsel %vm36, %v404, %v406
  %v411 = vsel %vm36, %v406, %v378
  %412 = vrot.lane.b32.xlu0 %v402, 1
  %v413 = vpop.permute.xlu0 %412
  %414 = vrot.lane.b32.xlu0 %v396, 1
  %v415 = vpop.permute.xlu0 %414
  %416 = vrot.lane.b32.xlu0 %v398, 1
  %v417 = vpop.permute.xlu0 %416
  %418 = vrot.lane.b32.xlu0 %v402, 127
  %v419 = vpop.permute.xlu0 %418
  %420 = vrot.lane.b32.xlu0 %v396, 127
  %v421 = vpop.permute.xlu0 %420
  %422 = vrot.lane.b32.xlu0 %v398, 127
  %v423 = vpop.permute.xlu0 %422
  %424 = vrot.lane.b32.xlu0 %v405, 1
  %v425 = vpop.permute.xlu0 %424
  %426 = vrot.lane.b32.xlu0 %v407, 1
  %v427 = vpop.permute.xlu0 %426
  %428 = vrot.lane.b32.xlu0 %v411, 1
  %v429 = vpop.permute.xlu0 %428
  %430 = vrot.lane.b32.xlu0 %v405, 127
  %v431 = vpop.permute.xlu0 %430
  %432 = vrot.lane.b32.xlu0 %v407, 127
  %v433 = vpop.permute.xlu0 %432
  %434 = vrot.lane.b32.xlu0 %v411, 127
  %v435 = vpop.permute.xlu0 %434
  %v436 = vmul.f32 %v370, 0.41421357
  %v437 = vmul.f32 %v371, 0.41421357
  %v438 = vmul.f32 %v372, 0.41421357
  %vm439 = vcmp.le.f32.partialorder %v373, %v436
  %vm440 = vcmp.le.f32.partialorder %v374, %v437
  %vm441 = vcmp.le.f32.partialorder %v375, %v438
  %v442 = vmul.f32 %v370, 2.4142137
  %v443 = vmul.f32 %v371, 2.4142137
  %v444 = vmul.f32 %v372, 2.4142137
  %vm445 = vcmp.ge.f32.partialorder %v373, %v442
  %vm446 = vcmp.ge.f32.partialorder %v374, %v443
  %vm447 = vcmp.ge.f32.partialorder %v375, %v444
  %v448 = vmul.f32 %v343, %v367
  %v449 = vmul.f32 %v344, %v368
  %v450 = vmul.f32 %v345, %v369
  %vm451 = vcmp.ge.f32.partialorder %v448, 0.0
  %vm452 = vcmp.ge.f32.partialorder %v449, 0.0
  %vm453 = vcmp.ge.f32.partialorder %v450, 0.0
  %v454 = vsel %vm451, %v413, %v419
  %v455 = vsel %vm452, %v415, %v421
  %v456 = vsel %vm453, %v417, %v423
  %v457 = vsel %vm445, %v402, %v454
  %v458 = vsel %vm446, %v396, %v455
  %v459 = vsel %vm447, %v398, %v456
  %v460 = vsel %vm439, %v380, %v457
  %v461 = vsel %vm440, %v382, %v458
  %v462 = vsel %vm441, %v384, %v459
  %v463 = vsel %vm451, %v431, %v425
  %v464 = vsel %vm452, %v433, %v427
  %v465 = vsel %vm453, %v435, %v429
  %v466 = vsel %vm445, %v405, %v463
  %v467 = vsel %vm446, %v407, %v464
  %v468 = vsel %vm447, %v411, %v465
  %v469 = vsel %vm439, %v386, %v466
  %v470 = vsel %vm440, %v388, %v467
  %v471 = vsel %vm441, %v390, %v468
  %vm472 = vcmp.ge.f32.partialorder %v376, %v460
  %vm473 = vcmp.ge.f32.partialorder %v377, %v461
  %vm474 = vcmp.ge.f32.partialorder %v378, %v462
  %vm475 = vcmp.ge.f32.partialorder %v376, %v469
  %vm476 = vcmp.ge.f32.partialorder %v377, %v470
  %vm477 = vcmp.ge.f32.partialorder %v378, %v471
  %vm478 = vmand %vm472, %vm475
  %vm479 = vmand %vm473, %vm476
  %vm480 = vmand %vm474, %vm477
  %v481 = vsel %vm478, %v376, 0.0
  %v482 = vsel %vm479, %v377, 0.0
  %v483 = vsel %vm480, %v378, 0.0
  %vm484 = vcmp.gt.f32.partialorder %v481, 200.0
  %vm485 = vcmp.gt.f32.partialorder %v482, 200.0
  %vm486 = vcmp.gt.f32.partialorder %v483, 200.0
  %v487 = vsel %vm484, 1, 0
  %v488 = vsel %vm485, 1, 0
  %v489 = vsel %vm486, 1, 0
  %v490 = vcvt.s32.f32 %v487
  %v491 = vcvt.s32.f32 %v488
  %v492 = vcvt.s32.f32 %v489
  %vm493 = vcmp.gt.f32.partialorder %v481, 100.0
  %vm494 = vcmp.gt.f32.partialorder %v482, 100.0
  %vm495 = vcmp.gt.f32.partialorder %v483, 100.0
  %496 = vrot.lane.b32.xlu0 %v490, 1
  %v497 = vpop.permute.xlu0 %496
  %498 = vrot.lane.b32.xlu0 %v491, 1
  %v499 = vpop.permute.xlu0 %498
  %500 = vrot.lane.b32.xlu0 %v492, 1
  %v501 = vpop.permute.xlu0 %500
  %v502 = vmax.f32 %v497, %v490
  %v503 = vmax.f32 %v499, %v491
  %v504 = vmax.f32 %v501, %v492
  %505 = vrot.lane.b32.xlu0 %v490, 127
  %v506 = vpop.permute.xlu0 %505
  %507 = vrot.lane.b32.xlu0 %v491, 127
  %v508 = vpop.permute.xlu0 %507
  %509 = vrot.lane.b32.xlu0 %v492, 127
  %v510 = vpop.permute.xlu0 %509
  %v511 = vmax.f32 %v502, %v506
  %v512 = vmax.f32 %v503, %v508
  %v513 = vmax.f32 %v504, %v510
  %v517 = vrot.slane %v511, 7
  %v518 = vrot.slane %v512, 7
  %v519 = vsel %vm20, %v517, %v518
  %v520 = vrot.slane %v513, 7
  %v521 = vsel %vm20, %v518, %v520
  %v525 = vsel %vm20, %v511, %v517
  %v526 = vmax.f32 %v525, %v511
  %v527 = vmax.f32 %v519, %v512
  %v528 = vmax.f32 %v521, %v513
  %v529 = vrot.slane %v511, 1
  %v530 = vrot.slane %v512, 1
  %v531 = vsel %vm36, %v529, %v530
  %v532 = vrot.slane %v513, 1
  %v533 = vsel %vm36, %v530, %v532
  %v537 = vsel %vm36, %v532, %v513
  %v538 = vmax.f32 %v526, %v531
  %v539 = vmax.f32 %v527, %v533
  %v540 = vmax.f32 %v528, %v537
  %vm541 = vcmp.gt.f32.partialorder %v538, 0.0
  %vm542 = vcmp.gt.f32.partialorder %v539, 0.0
  %vm543 = vcmp.gt.f32.partialorder %v540, 0.0
  %vm544 = vmand %vm493, %vm541
  %vm545 = vmand %vm494, %vm542
  %vm546 = vmand %vm495, %vm543
  %vm547 = vmxor %vm280, %vm544
  %vm548 = vmxor %vm281, %vm545
  %vm549 = vmxor %vm282, %vm546
  %v550 = vsel %vm547, 1, 0
  %v551 = vsel %vm548, 1, 0
  %v552 = vsel %vm549, 1, 0
  %v553 = vcvt.s32.f32 %v550
  %v554 = vcvt.s32.f32 %v551
  %v555 = vcvt.s32.f32 %v552
  %v556 = vlaneseq
  %v557 = vshrl.u32 %v556, 7
  %v558 = vadd.s32 %v557, 8
  %v559 = vadd.s32 %v557, 16
  %v560 = vlaneseq
  %v561 = vand.u32 %v560, 127
  %s562 = smul.u32 0, 16
  %v563 = vstv %s562
  %v564 = vadd.s32 %v563, %v557
  %v565 = vadd.s32 %v563, %v558
  %v566 = vadd.s32 %v563, %v559
  %v567 = vsub.s32 %v564, 3
  %v568 = vsub.s32 %v565, 3
  %v569 = vsub.s32 %v566, 3
  %vm570 = vcmp.ge.s32.totalorder %v557, 3
  %vm571 = vcmp.ge.s32.totalorder %v558, 3
  %vm572 = vcmp.ge.s32.totalorder %v559, 3
  %vm573 = vcmp.lt.s32.totalorder %v557, 19
  %vm574 = vcmp.lt.s32.totalorder %v558, 19
  %vm575 = vcmp.lt.s32.totalorder %v559, 19
  %vm576 = vmand %vm570, %vm573
  %vm577 = vmand %vm571, %vm574
  %vm578 = vmand %vm572, %vm575
  %vm579 = vcmp.lt.s32.totalorder %v567, 16
  %vm580 = vcmp.lt.s32.totalorder %v568, 16
  %vm581 = vcmp.lt.s32.totalorder %v569, 16
  %vm582 = vmand %vm576, %vm579
  %vm583 = vmand %vm577, %vm580
  %vm584 = vmand %vm578, %vm581
  %vm585 = vcmp.ge.s32.totalorder %v561, 3
  %vm586 = vmand %vm582, %vm585
  %vm587 = vmand %vm583, %vm585
  %vm588 = vmand %vm584, %vm585
  %vm589 = vcmp.lt.s32.totalorder %v561, 19
  %vm590 = vmand %vm586, %vm589
  %vm591 = vmand %vm587, %vm589
  %vm592 = vmand %vm588, %vm589
  %v593 = vsel %vm590, %v553, 0.0
  %v594 = vsel %vm591, %v554, 0.0
  %v595 = vsel %vm592, %v555, 0.0
  %v596 = vadd.f32 %v593, %v594
  %v597 = vadd.f32 %v596, %v595
  %598 = vadd.xlane.f32.xlu0 %v597
  %v599 = vpop.xlane.xlu0 %598
  %v600 = vrot.slane %v599, 4
  %v601 = vadd.f32 %v599, %v600
  %v602 = vrot.slane %v601, 2
  %v603 = vadd.f32 %v601, %v602
  %v604 = vrot.slane %v603, 1
  %v605 = vadd.f32 %v603, %v604
  %s606 = vtos %v605
  %v607 = vstv %s606
  %608 = vst [vmem:[%s2] sm:$0xff] %v607
  // Predicated region
  $region10: #{canny_edge_loss.1} parent=0 // pred_check
    _
  $region11: #{canny_edge_loss.1} parent=0 // pred_check_branch
    %610 = sbr.rel (0) target = $region13
  $region12: #{canny_edge_loss.1} parent=0 // pred_region
    _
  $region13: #{canny_edge_loss.1} parent=0 // pred_fallthru
    _
  // Predicated region
  $region14: #{canny_edge_loss.1} parent=0 // pred_check
    _
  $region15: #{canny_edge_loss.1} parent=0 // pred_check_branch
    %612 = sbr.rel (0) target = $region17
  $region16: #{canny_edge_loss.1} parent=0 // pred_region
    _
  $region17: #{canny_edge_loss.1} parent=0 // pred_fallthru
    _

</llo_original>
